<compile_context>
chip_gen: v7x
topology: tpu7x:2x2x1
jax: 0.10.0
libtpu: 0.0.40
codegen_flags: <defaults>
</compile_context>

<pallas_src>
import functools

import numpy as np
import jax
import jax.numpy as jnp
from jax.experimental import pallas as pl
from jax.experimental.pallas import tpu as pltpu


def _round_up(x, m):
    return (x + m - 1) // m * m


def _conv_bn_act_res_kernel(x_ref, w_ref, mask_ref, gamma_ref, beta_ref, o_ref,
                            sum_ref, ssq_ref, acc_ref, *,
                            H, W, cpad, cout, scale, eps, use_relu, residual,
                            stat_count, mxu_bf16):
    """grid = (2, nb): axis 0 = pass (0: conv+stats, 1: normalize), axis 1 = batch block.

    x_ref     : (cpad, B*HW)   batch block; channels on sublanes, (image, pixel) on lanes
    w_ref     : (cout, 9*cpad) conv weight, tap-major K, channel-padded to cpad
    mask_ref  : (9, B*HW)      {0,1} border masks, one row per tap
    gamma/beta: (cout, 1)      BN affine params
    o_ref     : (cout, B*HW)
    sum/ssq   : (cout, 1) VMEM scratch; acc_ref: (nb, cout, B*HW) VMEM scratch
    """
    p = pl.program_id(0)
    n = pl.program_id(1)

    @pl.when((p == 0) & (n == 0))
    def _init():
        sum_ref[...] = jnp.zeros_like(sum_ref)
        ssq_ref[...] = jnp.zeros_like(ssq_ref)

    @pl.when(p == 0)
    def _conv_and_stats():
        x = x_ref[...]                                       # (cpad, B*HW) f32
        xc = x.astype(jnp.bfloat16) if mxu_bf16 else x       # cast ONCE before rolls
        bhw = xc.shape[1]
        taps = []
        t = 0
        for dy in range(3):
            for dx in range(3):
                off = (dy - 1) * W + (dx - 1)                # flat source offset
                if off == 0:
                    shifted = xc                             # center tap == x
                else:
                    # shifted[l] = x[l + off]; cross-image / wrap reads only occur
                    # at image borders, which the masks zero out.
                    shifted = pltpu.roll(xc, shift=(-off) % bhw, axis=1)
                taps.append(shifted * mask_ref[pl.ds(t, 1), :])
                t += 1
        patches = jnp.concatenate(taps, axis=0)              # (9*cpad, B*HW), 8-aligned
        acc = jnp.dot(w_ref[...], patches,
                      preferred_element_type=jnp.float32)    # (cout, B*HW) f32
        sum_ref[...] += jnp.sum(acc, axis=1, keepdims=True)
        ssq_ref[...] += jnp.sum(acc * acc, axis=1, keepdims=True)
        acc_ref[n] = acc                                     # keep for pass 1

    @pl.when(p == 1)
    def _finalize():
        acc = acc_ref[n]                                     # (cout, B*HW) f32
        inv_cnt = 1.0 / float(stat_count)
        mean = sum_ref[...] * inv_cnt                        # (cout, 1)
        # TODO(synk): E[y^2]-mean^2 can cancel for very large |mean|/std inputs;
        # a shifted/Welford accumulation would be more robust.
        var = ssq_ref[...] * inv_cnt - mean * mean           # biased variance
        a = gamma_ref[...] * jax.lax.rsqrt(var + eps)
        b = beta_ref[...] - mean * a
        y = acc * a + b
        y = jnp.maximum(y, 0.0) if use_relu else jax.nn.sigmoid(y)
        y = y * scale
        if residual:
            # x is zero-padded to cpad >= cout channels, so rows [:cout] are
            # exactly the channel pad/slice "upsample" of the input.
            y = y + x_ref[pl.ds(0, cout), :]
        o_ref[...] = y.astype(o_ref.dtype)


def conv_block_small_forward(x_nchw, weight_oihw, gamma, beta, *,
                             scale=1.0, residual=True, use_relu=True,
                             eps=1e-5, mxu_bf16=False):
    """Forward pass of ConvBlockSmall.

    x_nchw      : (N, Cin, H, W)    float32 (PyTorch convention)
    weight_oihw : (Cout, Cin, 3, 3) conv weight (PyTorch convention)
    gamma, beta : (Cout,)           BatchNorm affine params
    """
    N, Cin, H, W = x_nchw.shape
    Cout = weight_oihw.shape[0]
    HW = H * W

    # Channel padding keeps every im2col tap on an 8-sublane boundary, and
    # (when residual) makes x[:Cout] exactly the zero-padded upsample.
    cpad = _round_up(max(Cin, Cout) if residual else Cin, 8)
    compute_dtype = jnp.bfloat16 if mxu_bf16 else jnp.float32

    # ---- choose batch block B (images stacked on lanes), B | N ----
    def _block_bytes(b):
        return 4 * b * HW * (2 * cpad + 2 * Cout + 2 * 9 * cpad)

    B = 1
    for cand in range(N, 0, -1):
        if N % cand:
            continue
        if cand < N and (cand * HW) % 128:
            continue
        if _block_bytes(cand) <= (12 << 20) or cand == 1:
            B = cand
            break
    nb = N // B
    BHW = B * HW

    # ---- wrapper-side layout plumbing (plain XLA) ----
    # x: NCHW -> (Cin, N*HW) with batch stacked on lanes, channels zero-padded.
    x_t = jnp.transpose(x_nchw, (1, 0, 2, 3)).reshape(Cin, N * HW)
    x_t = x_t.astype(jnp.float32)
    if cpad > Cin:
        x_t = jnp.concatenate(
            [x_t, jnp.zeros((cpad - Cin, N * HW), jnp.float32)], axis=0)

    # w: OIHW -> (Cout, 9*cpad), tap-major K with zero columns for pad channels.
    w_t = jnp.transpose(weight_oihw, (0, 2, 3, 1)).astype(jnp.float32)  # (Cout,3,3,Cin)
    if cpad > Cin:
        w_t = jnp.pad(w_t, ((0, 0), (0, 0), (0, 0), (0, cpad - Cin)))
    w2 = w_t.reshape(Cout, 9 * cpad).astype(compute_dtype)

    gamma2 = gamma.reshape(Cout, 1).astype(jnp.float32)
    beta2 = beta.reshape(Cout, 1).astype(jnp.float32)

    # Hoisted 3x3 border masks: one {0,1} row per tap, period HW along lanes.
    lane = np.arange(BHW)
    col = (lane % HW) % W
    row = (lane % HW) // W
    mrows = []
    for dy in range(3):
        for dx in range(3):
            m = np.ones(BHW, dtype=bool)
            if dy == 0:
                m &= row >= 1
            elif dy == 2:
                m &= row < H - 1
            if dx == 0:
                m &= col >= 1
            elif dx == 2:
                m &= col < W - 1
            mrows.append(m)
    mask = jnp.asarray(np.stack(mrows).astype(np.float32)).astype(compute_dtype)

    kernel = functools.partial(
        _conv_bn_act_res_kernel,
        H=H, W=W, cpad=cpad, cout=Cout,
        scale=float(scale), eps=float(eps),
        use_relu=bool(use_relu), residual=bool(residual),
        stat_count=N * HW, mxu_bf16=bool(mxu_bf16))

    itemsize = 2 if mxu_bf16 else 4
    flops = 2 * N * HW * (9 * cpad) * Cout                   # conv matmul (one pass)
    transcendentals = (0 if use_relu else N * HW * Cout) + Cout
    bytes_accessed = ((2 if nb > 1 else 1) * cpad * N * HW * 4   # x (re-read only if nb>1)
                      + Cout * 9 * cpad * itemsize + 9 * BHW * itemsize
                      + 2 * Cout * 4
                      + Cout * N * HW * 4)                   # output written once

    est_vmem = 4 * (2 * cpad * BHW + 2 * Cout * BHW + nb * Cout * BHW
                    + 2 * 9 * cpad * BHW + 9 * BHW + Cout * 9 * cpad + 2 * Cout)
    # v7x has 64 MiB VMEM per TC (32 MiB scoped default); stay comfortably inside.
    vmem_limit = int(min(64 << 20, max(32 << 20, 4 * est_vmem)))

    out_flat = pl.pallas_call(
        kernel,
        out_shape=jax.ShapeDtypeStruct((Cout, N * HW), jnp.float32),
        grid=(2, nb),                                        # (pass, batch block)
        in_specs=[
            pl.BlockSpec((cpad, BHW), lambda p, n: (0, n)),
            pl.BlockSpec((Cout, 9 * cpad), lambda p, n: (0, 0)),
            pl.BlockSpec((9, BHW), lambda p, n: (0, 0)),
            pl.BlockSpec((Cout, 1), lambda p, n: (0, 0)),
            pl.BlockSpec((Cout, 1), lambda p, n: (0, 0)),
        ],
        # Pass 0 maps every step to output block 0, so nothing is flushed to
        # HBM until pass 1 writes real data (no wasted pass-0 writeback).
        out_specs=pl.BlockSpec((Cout, BHW), lambda p, n: (0, p * n)),
        scratch_shapes=[
            pltpu.VMEM((Cout, 1), jnp.float32),              # per-channel sum
            pltpu.VMEM((Cout, 1), jnp.float32),              # per-channel sum of squares
            pltpu.VMEM((nb, Cout, BHW), jnp.float32),        # resident conv result
        ],
        compiler_params=pltpu.CompilerParams(
            # Cross-batch BN reduction (shared stats scratch) + pass ordering:
            # both grid axes must stay sequential.
            dimension_semantics=("arbitrary", "arbitrary"),
            vmem_limit_bytes=vmem_limit,
        ),
        cost_estimate=pl.CostEstimate(
            flops=flops, transcendentals=transcendentals,
            bytes_accessed=bytes_accessed),
    )(x_t, w2, mask, gamma2, beta2)

    # (Cout, N*HW) -> (N, Cout, H, W): wrapper-side layout plumbing only.
    return jnp.transpose(out_flat.reshape(Cout, N, H, W), (1, 0, 2, 3))


def xavier_uniform(key, out_ch, in_ch, kh, kw):
    fan_in = in_ch * kh * kw
    fan_out = out_ch * kh * kw
    bound = (6.0 / (fan_in + fan_out)) ** 0.5
    return jax.random.uniform(key, (out_ch, in_ch, kh, kw),
                              minval=-bound, maxval=bound, dtype=jnp.float32)


def _reference_forward(x, w, gamma, beta, *, scale, residual, use_relu, eps=1e-5):
    """Pure-JAX reference matching the PyTorch module (training-mode BN)."""
    y = jax.lax.conv_general_dilated(
        x, w, window_strides=(1, 1), padding=((1, 1), (1, 1)),
        dimension_numbers=("NCHW", "OIHW", "NCHW"))
    mean = jnp.mean(y, axis=(0, 2, 3), keepdims=True)
    var = jnp.mean((y - mean) ** 2, axis=(0, 2, 3), keepdims=True)
    y = (y - mean) * jax.lax.rsqrt(var + eps)
    y = y * gamma.reshape(1, -1, 1, 1) + beta.reshape(1, -1, 1, 1)
    y = jnp.maximum(y, 0.0) if use_relu else jax.nn.sigmoid(y)
    y = scale * y
    if residual:
        N, Cin, H, W = x.shape
        Cout = w.shape[0]
        if Cout > Cin:
            res = jnp.concatenate(
                [x, jnp.zeros((N, Cout - Cin, H, W), x.dtype)], axis=1)
        elif Cout < Cin:
            res = x[:, :Cout]
        else:
            res = x
        y = y + res
    return y


if __name__ == "__main__":
    # ConvBlockSmall(in_size=(4, 16, 16), width=8, residual=True,
    #                scale=1.0, use_relu=True)
    N, Cin, H, W = 2, 4, 16, 16
    Cout = 8
    scale = 1.0

    key = jax.random.PRNGKey(0)
    k_x, k_w = jax.random.split(key)
    x = jax.random.normal(k_x, (N, Cin, H, W), dtype=jnp.float32)
    weight = xavier_uniform(k_w, Cout, Cin, 3, 3)        # xavier_uniform_ init
    gamma = jnp.ones((Cout,), jnp.float32)               # fresh BatchNorm2d
    beta = jnp.zeros((Cout,), jnp.float32)

    out = conv_block_small_forward(x, weight, gamma, beta,
                                   scale=scale, residual=True, use_relu=True)
    out = jax.block_until_ready(out)
    assert out.shape == (N, Cout, H, W)

    ref = _reference_forward(x, weight, gamma, beta,
                             scale=scale, residual=True, use_relu=True)
    max_err = float(jnp.max(jnp.abs(out - ref)))
    assert max_err < 1e-3, f"max |err| = {max_err}"
    print("KERNEL_OK")
</pallas_src>

<mosaic_0001>
module attributes {stable_mosaic.version = 11 : i64} {
  func.func @_conv_bn_act_res_kernel(%arg0: i32, %arg1: i32, %arg2: memref<8x512xf32, #tpu.memory_space<vmem>>, %arg3: memref<8x72xf32, #tpu.memory_space<vmem>>, %arg4: memref<9x512xf32, #tpu.memory_space<vmem>>, %arg5: memref<8x1xf32, #tpu.memory_space<vmem>>, %arg6: memref<8x1xf32, #tpu.memory_space<vmem>>, %arg7: memref<8x512xf32, #tpu.memory_space<vmem>>, %arg8: memref<8x1xf32, #tpu.memory_space<vmem>>, %arg9: memref<8x1xf32, #tpu.memory_space<vmem>>, %arg10: memref<1x8x512xf32, #tpu.memory_space<vmem>>) attributes {dimension_semantics = [#tpu.dimension_semantics<arbitrary>, #tpu.dimension_semantics<arbitrary>], iteration_bounds = array<i64: 2, 1>, scalar_prefetch = 0 : i64, scratch_operands = 3 : i64, tpu.core_type = #tpu.core_type<tc>, window_params = [{transform_indices = @transform_0, window_bounds = array<i64: 8, 512>}, {pipeline_mode = #tpu.pipeline_mode<synchronous>, transform_indices = @transform_1, window_bounds = array<i64: 8, 72>}, {pipeline_mode = #tpu.pipeline_mode<synchronous>, transform_indices = @transform_2, window_bounds = array<i64: 9, 512>}, {pipeline_mode = #tpu.pipeline_mode<synchronous>, transform_indices = @transform_3, window_bounds = array<i64: 8, 1>}, {pipeline_mode = #tpu.pipeline_mode<synchronous>, transform_indices = @transform_4, window_bounds = array<i64: 8, 1>}, {transform_indices = @transform_5, window_bounds = array<i64: 8, 512>}]} {
    %c0_i32 = arith.constant 0 : i32
    %0 = arith.cmpi eq, %arg0, %c0_i32 : i32
    %c0_i32_0 = arith.constant 0 : i32
    %1 = arith.cmpi eq, %arg1, %c0_i32_0 : i32
    %2 = arith.andi %0, %1 : i1
    %3 = arith.extui %2 : i1 to i32
    %c0_i32_1 = arith.constant 0 : i32
    %4 = arith.cmpi ne, %3, %c0_i32_1 : i32
    scf.if %4 {
      %cst = arith.constant 0.000000e+00 : f32
      %11 = vector.broadcast %cst : f32 to vector<8x1xf32>
      %c0 = arith.constant 0 : index
      %c0_5 = arith.constant 0 : index
      %12 = vector.load %arg8[%c0, %c0_5] : memref<8x1xf32, #tpu.memory_space<vmem>>, vector<8x1xf32>
      tpu.vector_store %arg8[%c0, %c0_5], %11 {strides = array<i32>} : memref<8x1xf32, #tpu.memory_space<vmem>>, vector<8x1xf32>,
      %cst_6 = arith.constant 0.000000e+00 : f32
      %13 = vector.broadcast %cst_6 : f32 to vector<8x1xf32>
      %c0_7 = arith.constant 0 : index
      %c0_8 = arith.constant 0 : index
      %14 = vector.load %arg9[%c0_7, %c0_8] : memref<8x1xf32, #tpu.memory_space<vmem>>, vector<8x1xf32>
      tpu.vector_store %arg9[%c0_7, %c0_8], %13 {strides = array<i32>} : memref<8x1xf32, #tpu.memory_space<vmem>>, vector<8x1xf32>,
    } else {
    }
    %c0_i32_2 = arith.constant 0 : i32
    %5 = arith.cmpi eq, %arg0, %c0_i32_2 : i32
    %6 = arith.extui %5 : i1 to i32
    %c0_i32_3 = arith.constant 0 : i32
    %7 = arith.cmpi ne, %6, %c0_i32_3 : i32
    scf.if %7 {
      %c0 = arith.constant 0 : index
      %c0_5 = arith.constant 0 : index
      %11 = vector.load %arg2[%c0, %c0_5] : memref<8x512xf32, #tpu.memory_space<vmem>>, vector<8x512xf32>
      %c17_i32 = arith.constant 17 : i32
      %12 = tpu.dynamic_rotate %11 by %c17_i32 dim 1 : vector<8x512xf32>, i32 -> vector<8x512xf32>
      %c0_6 = arith.constant 0 : index
      %c0_7 = arith.constant 0 : index
      %13 = vector.load %arg4[%c0_6, %c0_7] : memref<9x512xf32, #tpu.memory_space<vmem>>, vector<1x512xf32>
      %14 = vector.broadcast %13 : vector<1x512xf32> to vector<8x512xf32>
      %15 = arith.mulf %12, %14 : vector<8x512xf32>
      %c16_i32 = arith.constant 16 : i32
      %16 = tpu.dynamic_rotate %11 by %c16_i32 dim 1 : vector<8x512xf32>, i32 -> vector<8x512xf32>
      %c1 = arith.constant 1 : index
      %c0_8 = arith.constant 0 : index
      %17 = vector.load %arg4[%c1, %c0_8] : memref<9x512xf32, #tpu.memory_space<vmem>>, vector<1x512xf32>
      %18 = vector.broadcast %17 : vector<1x512xf32> to vector<8x512xf32>
      %19 = arith.mulf %16, %18 : vector<8x512xf32>
      %c15_i32 = arith.constant 15 : i32
      %20 = tpu.dynamic_rotate %11 by %c15_i32 dim 1 : vector<8x512xf32>, i32 -> vector<8x512xf32>
      %c2 = arith.constant 2 : index
      %c0_9 = arith.constant 0 : index
      %21 = vector.load %arg4[%c2, %c0_9] : memref<9x512xf32, #tpu.memory_space<vmem>>, vector<1x512xf32>
      %22 = vector.broadcast %21 : vector<1x512xf32> to vector<8x512xf32>
      %23 = arith.mulf %20, %22 : vector<8x512xf32>
      %c1_i32_10 = arith.constant 1 : i32
      %24 = tpu.dynamic_rotate %11 by %c1_i32_10 dim 1 : vector<8x512xf32>, i32 -> vector<8x512xf32>
      %c3 = arith.constant 3 : index
      %c0_11 = arith.constant 0 : index
      %25 = vector.load %arg4[%c3, %c0_11] : memref<9x512xf32, #tpu.memory_space<vmem>>, vector<1x512xf32>
      %26 = vector.broadcast %25 : vector<1x512xf32> to vector<8x512xf32>
      %27 = arith.mulf %24, %26 : vector<8x512xf32>
      %c4 = arith.constant 4 : index
      %c0_12 = arith.constant 0 : index
      %28 = vector.load %arg4[%c4, %c0_12] : memref<9x512xf32, #tpu.memory_space<vmem>>, vector<1x512xf32>
      %29 = vector.broadcast %28 : vector<1x512xf32> to vector<8x512xf32>
      %30 = arith.mulf %11, %29 : vector<8x512xf32>
      %c511_i32 = arith.constant 511 : i32
      %31 = tpu.dynamic_rotate %11 by %c511_i32 dim 1 : vector<8x512xf32>, i32 -> vector<8x512xf32>
      %c5 = arith.constant 5 : index
      %c0_13 = arith.constant 0 : index
      %32 = vector.load %arg4[%c5, %c0_13] : memref<9x512xf32, #tpu.memory_space<vmem>>, vector<1x512xf32>
      %33 = vector.broadcast %32 : vector<1x512xf32> to vector<8x512xf32>
      %34 = arith.mulf %31, %33 : vector<8x512xf32>
      %c497_i32 = arith.constant 497 : i32
      %35 = tpu.dynamic_rotate %11 by %c497_i32 dim 1 : vector<8x512xf32>, i32 -> vector<8x512xf32>
      %c6 = arith.constant 6 : index
      %c0_14 = arith.constant 0 : index
      %36 = vector.load %arg4[%c6, %c0_14] : memref<9x512xf32, #tpu.memory_space<vmem>>, vector<1x512xf32>
      %37 = vector.broadcast %36 : vector<1x512xf32> to vector<8x512xf32>
      %38 = arith.mulf %35, %37 : vector<8x512xf32>
      %c496_i32 = arith.constant 496 : i32
      %39 = tpu.dynamic_rotate %11 by %c496_i32 dim 1 : vector<8x512xf32>, i32 -> vector<8x512xf32>
      %c7 = arith.constant 7 : index
      %c0_15 = arith.constant 0 : index
      %40 = vector.load %arg4[%c7, %c0_15] : memref<9x512xf32, #tpu.memory_space<vmem>>, vector<1x512xf32>
      %41 = vector.broadcast %40 : vector<1x512xf32> to vector<8x512xf32>
      %42 = arith.mulf %39, %41 : vector<8x512xf32>
      %c495_i32 = arith.constant 495 : i32
      %43 = tpu.dynamic_rotate %11 by %c495_i32 dim 1 : vector<8x512xf32>, i32 -> vector<8x512xf32>
      %c8 = arith.constant 8 : index
      %c0_16 = arith.constant 0 : index
      %44 = vector.load %arg4[%c8, %c0_16] : memref<9x512xf32, #tpu.memory_space<vmem>>, vector<1x512xf32>
      %45 = vector.broadcast %44 : vector<1x512xf32> to vector<8x512xf32>
      %46 = arith.mulf %43, %45 : vector<8x512xf32>
      %47 = tpu.concatenate %15, %19, %23, %27, %30, %34, %38, %42, %46 in 0 : vector<8x512xf32>, vector<8x512xf32>, vector<8x512xf32>, vector<8x512xf32>, vector<8x512xf32>, vector<8x512xf32>, vector<8x512xf32>, vector<8x512xf32>, vector<8x512xf32> -> vector<72x512xf32>
      %c0_17 = arith.constant 0 : index
      %c0_18 = arith.constant 0 : index
      %48 = vector.load %arg3[%c0_17, %c0_18] : memref<8x72xf32, #tpu.memory_space<vmem>>, vector<8x72xf32>
      %cst = arith.constant dense<0.000000e+00> : vector<8x512xf32>
      %49 = tpu.matmul %48, %47, %cst {dimension_numbers = #tpu.dot_dimension_numbers<[1], [0], [0], [1], [0, 0, 1, 1], [], []>} : vector<8x72xf32>, vector<72x512xf32>, vector<8x512xf32> -> vector<8x512xf32>
      %c0_19 = arith.constant 0 : index
      %c0_20 = arith.constant 0 : index
      %50 = vector.load %arg8[%c0_19, %c0_20] : memref<8x1xf32, #tpu.memory_space<vmem>>, vector<8x1xf32>
      %cst_21 = arith.constant dense<0.000000e+00> : vector<8xf32>
      %51 = vector.multi_reduction <add>, %49, %cst_21 [1] : vector<8x512xf32> to vector<8xf32>
      %52 = vector.shape_cast %51 : vector<8xf32> to vector<8x1xf32>
      %53 = arith.addf %50, %52 : vector<8x1xf32>
      %c0_22 = arith.constant 0 : index
      %c0_23 = arith.constant 0 : index
      %54 = vector.load %arg8[%c0_22, %c0_23] : memref<8x1xf32, #tpu.memory_space<vmem>>, vector<8x1xf32>
      tpu.vector_store %arg8[%c0_22, %c0_23], %53 {strides = array<i32>} : memref<8x1xf32, #tpu.memory_space<vmem>>, vector<8x1xf32>,
      %c0_24 = arith.constant 0 : index
      %c0_25 = arith.constant 0 : index
      %55 = vector.load %arg9[%c0_24, %c0_25] : memref<8x1xf32, #tpu.memory_space<vmem>>, vector<8x1xf32>
      %56 = arith.mulf %49, %49 : vector<8x512xf32>
      %cst_26 = arith.constant dense<0.000000e+00> : vector<8xf32>
      %57 = vector.multi_reduction <add>, %56, %cst_26 [1] : vector<8x512xf32> to vector<8xf32>
      %58 = vector.shape_cast %57 : vector<8xf32> to vector<8x1xf32>
      %59 = arith.addf %55, %58 : vector<8x1xf32>
      %c0_27 = arith.constant 0 : index
      %c0_28 = arith.constant 0 : index
      %60 = vector.load %arg9[%c0_27, %c0_28] : memref<8x1xf32, #tpu.memory_space<vmem>>, vector<8x1xf32>
      tpu.vector_store %arg9[%c0_27, %c0_28], %59 {strides = array<i32>} : memref<8x1xf32, #tpu.memory_space<vmem>>, vector<8x1xf32>,
      %61 = arith.index_cast %arg1 : i32 to index
      %c0_29 = arith.constant 0 : index
      %c0_30 = arith.constant 0 : index
      %62 = vector.load %arg10[%61, %c0_29, %c0_30] : memref<1x8x512xf32, #tpu.memory_space<vmem>>, vector<1x8x512xf32>
      %63 = vector.shape_cast %62 : vector<1x8x512xf32> to vector<8x512xf32>
      %64 = vector.shape_cast %49 : vector<8x512xf32> to vector<1x8x512xf32>
      tpu.vector_store %arg10[%61, %c0_29, %c0_30], %64 {strides = array<i32>} : memref<1x8x512xf32, #tpu.memory_space<vmem>>, vector<1x8x512xf32>,
    } else {
    }
    %c1_i32 = arith.constant 1 : i32
    %8 = arith.cmpi eq, %arg0, %c1_i32 : i32
    %9 = arith.extui %8 : i1 to i32
    %c0_i32_4 = arith.constant 0 : i32
    %10 = arith.cmpi ne, %9, %c0_i32_4 : i32
    scf.if %10 {
      %11 = arith.index_cast %arg1 : i32 to index
      %c0 = arith.constant 0 : index
      %c0_5 = arith.constant 0 : index
      %12 = vector.load %arg10[%11, %c0, %c0_5] : memref<1x8x512xf32, #tpu.memory_space<vmem>>, vector<1x8x512xf32>
      %13 = vector.shape_cast %12 : vector<1x8x512xf32> to vector<8x512xf32>
      %c0_6 = arith.constant 0 : index
      %c0_7 = arith.constant 0 : index
      %14 = vector.load %arg8[%c0_6, %c0_7] : memref<8x1xf32, #tpu.memory_space<vmem>>, vector<8x1xf32>
      %cst = arith.constant 0.001953125 : f32
      %15 = vector.broadcast %cst : f32 to vector<8x1xf32>
      %16 = arith.mulf %14, %15 : vector<8x1xf32>
      %c0_8 = arith.constant 0 : index
      %c0_9 = arith.constant 0 : index
      %17 = vector.load %arg9[%c0_8, %c0_9] : memref<8x1xf32, #tpu.memory_space<vmem>>, vector<8x1xf32>
      %cst_10 = arith.constant 0.001953125 : f32
      %18 = vector.broadcast %cst_10 : f32 to vector<8x1xf32>
      %19 = arith.mulf %17, %18 : vector<8x1xf32>
      %20 = arith.mulf %16, %16 : vector<8x1xf32>
      %21 = arith.subf %19, %20 : vector<8x1xf32>
      %c0_11 = arith.constant 0 : index
      %c0_12 = arith.constant 0 : index
      %22 = vector.load %arg5[%c0_11, %c0_12] : memref<8x1xf32, #tpu.memory_space<vmem>>, vector<8x1xf32>
      %cst_13 = arith.constant 9.99999974E-6 : f32
      %23 = vector.broadcast %cst_13 : f32 to vector<8x1xf32>
      %24 = arith.addf %21, %23 : vector<8x1xf32>
      %25 = math.rsqrt %24 : vector<8x1xf32>
      %26 = arith.mulf %22, %25 : vector<8x1xf32>
      %c0_14 = arith.constant 0 : index
      %c0_15 = arith.constant 0 : index
      %27 = vector.load %arg6[%c0_14, %c0_15] : memref<8x1xf32, #tpu.memory_space<vmem>>, vector<8x1xf32>
      %28 = arith.mulf %16, %26 : vector<8x1xf32>
      %29 = arith.subf %27, %28 : vector<8x1xf32>
      %30 = vector.broadcast %26 : vector<8x1xf32> to vector<8x512xf32>
      %31 = arith.mulf %13, %30 : vector<8x512xf32>
      %32 = vector.broadcast %29 : vector<8x1xf32> to vector<8x512xf32>
      %33 = arith.addf %31, %32 : vector<8x512xf32>
      %cst_16 = arith.constant 0.000000e+00 : f32
      %34 = vector.broadcast %cst_16 : f32 to vector<8x512xf32>
      %35 = arith.maximumf %33, %34 : vector<8x512xf32>
      %cst_17 = arith.constant 1.000000e+00 : f32
      %36 = vector.broadcast %cst_17 : f32 to vector<8x512xf32>
      %37 = arith.mulf %35, %36 : vector<8x512xf32>
      %c0_18 = arith.constant 0 : index
      %c0_19 = arith.constant 0 : index
      %38 = vector.load %arg2[%c0_18, %c0_19] : memref<8x512xf32, #tpu.memory_space<vmem>>, vector<8x512xf32>
      %39 = arith.addf %37, %38 : vector<8x512xf32>
      %c0_20 = arith.constant 0 : index
      %c0_21 = arith.constant 0 : index
      %40 = vector.load %arg7[%c0_20, %c0_21] : memref<8x512xf32, #tpu.memory_space<vmem>>, vector<8x512xf32>
      tpu.vector_store %arg7[%c0_20, %c0_21], %39 {strides = array<i32>} : memref<8x512xf32, #tpu.memory_space<vmem>>, vector<8x512xf32>,
    } else {
    }
    return
  }
  func.func @transform_0(%arg0: i32, %arg1: i32) -> (i32, i32) {
    %c0_i32 = arith.constant 0 : i32
    %c0_i32_0 = arith.constant 0 : i32
    return %c0_i32, %arg1 : i32, i32
  }
  func.func @transform_1(%arg0: i32, %arg1: i32) -> (i32, i32) {
    %c0_i32 = arith.constant 0 : i32
    %c0_i32_0 = arith.constant 0 : i32
    %c0_i32_1 = arith.constant 0 : i32
    return %c0_i32, %c0_i32_0 : i32, i32
  }
  func.func @transform_2(%arg0: i32, %arg1: i32) -> (i32, i32) {
    %c0_i32 = arith.constant 0 : i32
    %c0_i32_0 = arith.constant 0 : i32
    %c0_i32_1 = arith.constant 0 : i32
    return %c0_i32, %c0_i32_0 : i32, i32
  }
  func.func @transform_3(%arg0: i32, %arg1: i32) -> (i32, i32) {
    %c0_i32 = arith.constant 0 : i32
    %c0_i32_0 = arith.constant 0 : i32
    %c0_i32_1 = arith.constant 0 : i32
    return %c0_i32, %c0_i32_0 : i32, i32
  }
  func.func @transform_4(%arg0: i32, %arg1: i32) -> (i32, i32) {
    %c0_i32 = arith.constant 0 : i32
    %c0_i32_0 = arith.constant 0 : i32
    %c0_i32_1 = arith.constant 0 : i32
    return %c0_i32, %c0_i32_0 : i32, i32
  }
  func.func @transform_5(%arg0: i32, %arg1: i32) -> (i32, i32) {
    %0 = arith.muli %arg0, %arg1 : i32
    %c0_i32 = arith.constant 0 : i32
    %c0_i32_0 = arith.constant 0 : i32
    return %c0_i32, %0 : i32, i32
  }
}

</mosaic_0001>

<llo_original>
// kernel: tpu_custom_call.1
$region0: #{tpu_custom_call.1}
  #allocation0 [shape = 'u32[]', space=smem, size = 0x4, offset = 0x4, fixed_abs, tag = 'smem constant byte address 0x4 - core index']
  #allocation1 [shape = 'u32[144,128]{1,0:T(1,128)}', space=vmem, size = 0x12000, scoped, tag = 'internal scratch']
  #allocation2 [shape = 'f32[8,1]{1,0:T(8,128)}', space=vmem, size = 0x1000, scoped, tag = 'scratch operand']
  #allocation3 [shape = 'f32[8,1]{1,0:T(8,128)}', space=vmem, size = 0x1000, scoped, tag = 'scratch operand']
  #allocation4 [shape = 'f32[1,8,512]{2,1,0:T(8,128)}', space=vmem, size = 0x4000, scoped, tag = 'scratch operand']
  %s0 = inlined_call_operand.hbm [shape: f32[8,512], index: 0, kind: input, shape index: {}]
  %s1 = inlined_call_operand.vmem [shape: f32[8,72], index: 1, kind: input, shape index: {}]
  %s2 = inlined_call_operand.hbm [shape: f32[9,512], index: 2, kind: input, shape index: {}]
  %s3 = inlined_call_operand.vmem [shape: f32[8,1], index: 3, kind: input, shape index: {}]
  %s4 = inlined_call_operand.vmem [shape: f32[8,1], index: 4, kind: input, shape index: {}]
  %s5 = inlined_call_operand.hbm [shape: f32[8,512], index: 5, kind: output, shape index: {}]
  %s6 = sld [smem:[#allocation0]]
  $region73: #{tpu_custom_call.1} parent=0
    _
  %s8 = ssub.s32 1, %s6
  %s9 = scalar_select 0, %s8, %s6
  $region1: #{tpu_custom_call.1} parent=0
    #allocation5 [shape = 'u8[16384]{0}', space=vmem, size = 0x4000, scoped, tag = 'input window, operand 0, single buffered']
    #allocation6 [shape = 's32[2]{0}', space=sflag, size = 0x8, scoped, tag = 'scoped memory for tpu_custom_call.1']
    #allocation7 [shape = 's32[2]{0}', space=sflag, size = 0x8, scoped, tag = 'scoped memory for tpu_custom_call.1']
    #allocation8 [shape = 'u8[32768]{0}', space=vmem, size = 0x8000, scoped, tag = 'input window, operand 2, single buffered']
    #allocation9 [shape = 's32[1]{0}', space=sflag, size = 0x4, scoped, tag = 'scoped memory for tpu_custom_call.1']
    #allocation10 [shape = 'u8[32768]{0}', space=vmem, size = 0x8000, scoped, tag = 'output window, operand 0']
    %10 = vsyncpa [#allocation6], 0
    %11 = vsyncpa [#allocation9], 0
    %12 = vsyncpa [#allocation7], 0
    %s13 = scalar_lea.sflag [#allocation7], 1
    %14 = vsyncpa %s13, 0
    loop: start=0, step=1, limit=4
    $region2: #{tpu_custom_call.1} parent=1 // loop_pre_header
      _
    $region3: #{tpu_custom_call.1} parent=1 // loop_header
      %s16 = sphi 0, %s20
      %p17 = scmp.ge.s32.totalorder %s16, 4
      %s23 = sphi 0, %s35
      %s24 = sphi 0, %s31
      %s25 = sphi 0, %s23
      %s26 = sphi 0, %s24
      %s27 = sphi 0, %s25
      %s28 = sphi 0, %s26
      %s38 = sphi 0, %s40
      %s41 = sphi 0, %s38
      %s42 = sphi 0, %s41
      %s58 = sphi 0, %s42
      %s62 = sphi 0, %s62
      %s64 = sphi 0, %s62
      %s65 = sphi 0, %s64
      %s79 = sphi 0, %s65
      %s83 = sphi 0, %s83
      %s85 = sphi 0, %s83
      %s86 = sphi 0, %s85
      %s100 = sphi 0, %s86
      %s104 = sphi 0, %s104
      %s106 = sphi 0, %s104
      %s107 = sphi 0, %s106
      %s121 = sphi 0, %s107
      %s125 = sphi 0, %s125
      %s127 = sphi 0, %s125
      %s128 = sphi 0, %s127
      %s142 = sphi 0, %s128
      %s150 = sphi 0, %s152
      %s153 = sphi 0, %s150
      %s154 = sphi 0, %s153
      %s170 = sphi 0, %s154
    $region4: #{tpu_custom_call.1} parent=1 // loop_header_branch
      %19 = sbr.rel (%p17) target = $region8
    $region5: #{tpu_custom_call.1} parent=1 // loop_body
      %s21 = ssub.s32 %s16, 1
      %s22 = ssub.s32 %s16, 2
      %s29 = sadd.s32 1, %s24
      %p30 = scmp.ge.s32.totalorder %s29, 1
      %s31 = scalar_select %p30, 0, %s29
      %s32 = sadd.s32 1, %s23
      %s33 = scalar_select %p30, %s32, %s23
      %p34 = scmp.ge.s32.totalorder %s33, 2
      %s35 = scalar_select %p34, 0, %s33
      %s36 = ssub.s32 %s24, %s31
      %p37 = scmp.eq.s32.totalorder %s36, 0
      %s39 = sadd.s32 %s38, 1
      %s40 = scalar_select %p37, %s38, %s39
      %p43 = pneg %p37
      %p44 = scmp.eq.s32.totalorder %s16, 1
      %p45 = por %p43, %p44
      %p46 = scmp.ne.s32.totalorder %s38, %s41
      %p47 = scmp.eq.s32.totalorder %s16, 0
      %p48 = por %p46, %p47
      %p49 = scmp.ne.s32.totalorder %s38, %s41
      %p50 = scmp.eq.s32.totalorder %s21, 1
      %p51 = por %p49, %p50
      %p52 = scmp.ne.s32.totalorder %s41, %s42
      %p53 = scmp.eq.s32.totalorder %s21, 0
      %p54 = por %p52, %p53
      %p55 = scmp.ne.s32.totalorder %s41, %s42
      %p56 = scmp.eq.s32.totalorder %s22, 1
      %p57 = por %p55, %p56
      %p59 = scmp.ne.s32.totalorder %s42, %s58
      %p60 = scmp.eq.s32.totalorder %s22, 0
      %p61 = por %p59, %p60
      %s63 = sadd.s32 %s62, 1
      %p66 = scmp.eq.s32.totalorder %s16, 1
      %p67 = scmp.ne.s32.totalorder %s62, %s64
      %p68 = scmp.eq.s32.totalorder %s16, 0
      %p69 = por %p67, %p68
      %p70 = scmp.ne.s32.totalorder %s62, %s64
      %p71 = scmp.eq.s32.totalorder %s21, 1
      %p72 = por %p70, %p71
      %p73 = scmp.ne.s32.totalorder %s64, %s65
      %p74 = scmp.eq.s32.totalorder %s21, 0
      %p75 = por %p73, %p74
      %p76 = scmp.ne.s32.totalorder %s64, %s65
      %p77 = scmp.eq.s32.totalorder %s22, 1
      %p78 = por %p76, %p77
      %p80 = scmp.ne.s32.totalorder %s65, %s79
      %p81 = scmp.eq.s32.totalorder %s22, 0
      %p82 = por %p80, %p81
      %s84 = sadd.s32 %s83, 1
      %p87 = scmp.eq.s32.totalorder %s16, 1
      %p88 = scmp.ne.s32.totalorder %s83, %s85
      %p89 = scmp.eq.s32.totalorder %s16, 0
      %p90 = por %p88, %p89
      %p91 = scmp.ne.s32.totalorder %s83, %s85
      %p92 = scmp.eq.s32.totalorder %s21, 1
      %p93 = por %p91, %p92
      %p94 = scmp.ne.s32.totalorder %s85, %s86
      %p95 = scmp.eq.s32.totalorder %s21, 0
      %p96 = por %p94, %p95
      %p97 = scmp.ne.s32.totalorder %s85, %s86
      %p98 = scmp.eq.s32.totalorder %s22, 1
      %p99 = por %p97, %p98
      %p101 = scmp.ne.s32.totalorder %s86, %s100
      %p102 = scmp.eq.s32.totalorder %s22, 0
      %p103 = por %p101, %p102
      %s105 = sadd.s32 %s104, 1
      %p108 = scmp.eq.s32.totalorder %s16, 1
      %p109 = scmp.ne.s32.totalorder %s104, %s106
      %p110 = scmp.eq.s32.totalorder %s16, 0
      %p111 = por %p109, %p110
      %p112 = scmp.ne.s32.totalorder %s104, %s106
      %p113 = scmp.eq.s32.totalorder %s21, 1
      %p114 = por %p112, %p113
      %p115 = scmp.ne.s32.totalorder %s106, %s107
      %p116 = scmp.eq.s32.totalorder %s21, 0
      %p117 = por %p115, %p116
      %p118 = scmp.ne.s32.totalorder %s106, %s107
      %p119 = scmp.eq.s32.totalorder %s22, 1
      %p120 = por %p118, %p119
      %p122 = scmp.ne.s32.totalorder %s107, %s121
      %p123 = scmp.eq.s32.totalorder %s22, 0
      %p124 = por %p122, %p123
      %s126 = sadd.s32 %s125, 1
      %p129 = scmp.eq.s32.totalorder %s16, 1
      %p130 = scmp.ne.s32.totalorder %s125, %s127
      %p131 = scmp.eq.s32.totalorder %s16, 0
      %p132 = por %p130, %p131
      %p133 = scmp.ne.s32.totalorder %s125, %s127
      %p134 = scmp.eq.s32.totalorder %s21, 1
      %p135 = por %p133, %p134
      %p136 = scmp.ne.s32.totalorder %s127, %s128
      %p137 = scmp.eq.s32.totalorder %s21, 0
      %p138 = por %p136, %p137
      %p139 = scmp.ne.s32.totalorder %s127, %s128
      %p140 = scmp.eq.s32.totalorder %s22, 1
      %p141 = por %p139, %p140
      %p143 = scmp.ne.s32.totalorder %s128, %s142
      %p144 = scmp.eq.s32.totalorder %s22, 0
      %p145 = por %p143, %p144
      %s146 = smul.u32 %s23, %s24
      %s147 = smul.u32 %s35, %s31
      %s148 = ssub.s32 %s146, %s147
      %p149 = scmp.eq.s32.totalorder %s148, 0
      %s151 = sadd.s32 %s150, 1
      %s152 = scalar_select %p149, %s150, %s151
      %p155 = pneg %p149
      %p156 = scmp.eq.s32.totalorder %s16, 1
      %p157 = por %p155, %p156
      %p158 = scmp.ne.s32.totalorder %s150, %s153
      %p159 = scmp.eq.s32.totalorder %s16, 0
      %p160 = por %p158, %p159
      %p161 = scmp.ne.s32.totalorder %s150, %s153
      %p162 = scmp.eq.s32.totalorder %s21, 1
      %p163 = por %p161, %p162
      %p164 = scmp.ne.s32.totalorder %s153, %s154
      %p165 = scmp.eq.s32.totalorder %s21, 0
      %p166 = por %p164, %p165
      %p167 = scmp.ne.s32.totalorder %s153, %s154
      %p168 = scmp.eq.s32.totalorder %s22, 1
      %p169 = por %p167, %p168
      %p171 = scmp.ne.s32.totalorder %s154, %s170
      %p172 = scmp.eq.s32.totalorder %s22, 0
      %p173 = por %p171, %p172
      %p174 = scmp.le.s32.totalorder 1, %s16
      %p175 = scmp.lt.s32.totalorder %s16, 3
      %p176 = pnand %p174, %p175
      %p177 = pneg %p176
      // Predicated region
      $region9: #{tpu_custom_call.1} parent=5 // pred_check
        _
      $region10: #{tpu_custom_call.1} parent=5 // pred_check_branch
        %179 = sbr.rel (%p176) target = $region12
      $region11: #{tpu_custom_call.1} parent=5 // pred_region
        %s180 = ssub.s32 %s16, 1
        // Predicated region
        $region13: #{tpu_custom_call.1} parent=11 // pred_check
          %p181 = pneg %p54
        $region14: #{tpu_custom_call.1} parent=11 // pred_check_branch
          %183 = sbr.rel (%p181) target = $region16
        $region15: #{tpu_custom_call.1} parent=11 // pred_region
          %s184 = smul.u32 4, %s26
          %s186 = ssub.s32 512, 512
          %187 = vsyncadd [#allocation6], %s186
          %s188 = smul.addr %s184, 128
          %s189 = scalar_lea.hbm %s0, %s188
          %s191 = sshll.u32 [#allocation5], 4
          %s192 = int_to_ptr.vmem [resolvable:$true] %s191
          %194 = dma.hbm_to_vmem [thread:$0]  %s189, 512, %s192, [#allocation6]
        $region16: #{tpu_custom_call.1} parent=11 // pred_fallthru
          _
        // Predicated region
        $region17: #{tpu_custom_call.1} parent=11 // pred_check
          %p195 = pneg %p75
        $region18: #{tpu_custom_call.1} parent=11 // pred_check_branch
          %197 = sbr.rel (%p195) target = $region20
        $region19: #{tpu_custom_call.1} parent=11 // pred_region
          _
        $region20: #{tpu_custom_call.1} parent=11 // pred_fallthru
          _
        // Predicated region
        $region21: #{tpu_custom_call.1} parent=11 // pred_check
          %p198 = pneg %p96
        $region22: #{tpu_custom_call.1} parent=11 // pred_check_branch
          %200 = sbr.rel (%p198) target = $region24
        $region23: #{tpu_custom_call.1} parent=11 // pred_region
          %s202 = ssub.s32 1024, 1024
          %203 = vsyncadd [#allocation9], %s202
          %s204 = sshll.u32 [#allocation8], 4
          %s205 = int_to_ptr.vmem [resolvable:$true] %s204
          %210 = dma.hbm_to_vmem [thread:$0]  %s2, 1024, %s205, [#allocation9], 512, 512, 32
        $region24: #{tpu_custom_call.1} parent=11 // pred_fallthru
          _
        // Predicated region
        $region25: #{tpu_custom_call.1} parent=11 // pred_check
          %p211 = pneg %p117
        $region26: #{tpu_custom_call.1} parent=11 // pred_check_branch
          %213 = sbr.rel (%p211) target = $region28
        $region27: #{tpu_custom_call.1} parent=11 // pred_region
          _
        $region28: #{tpu_custom_call.1} parent=11 // pred_fallthru
          _
        // Predicated region
        $region29: #{tpu_custom_call.1} parent=11 // pred_check
          %p214 = pneg %p138
        $region30: #{tpu_custom_call.1} parent=11 // pred_check_branch
          %216 = sbr.rel (%p214) target = $region32
        $region31: #{tpu_custom_call.1} parent=11 // pred_region
          _
        $region32: #{tpu_custom_call.1} parent=11 // pred_fallthru
          _
      $region12: #{tpu_custom_call.1} parent=5 // pred_fallthru
        _
      %p217 = scmp.lt.s32.totalorder %s16, 2
      // Predicated region
      $region33: #{tpu_custom_call.1} parent=5 // pred_check
        %p218 = pneg %p217
      $region34: #{tpu_custom_call.1} parent=5 // pred_check_branch
        %220 = sbr.rel (%p218) target = $region36
      $region35: #{tpu_custom_call.1} parent=5 // pred_region
        _
      $region36: #{tpu_custom_call.1} parent=5 // pred_fallthru
        _
      %p221 = scmp.le.s32.totalorder 1, %s16
      %p222 = scmp.lt.s32.totalorder %s16, 3
      %p223 = pnand %p221, %p222
      %p224 = pneg %p223
      // Predicated region
      $region37: #{tpu_custom_call.1} parent=5 // pred_check
        _
      $region38: #{tpu_custom_call.1} parent=5 // pred_check_branch
        %226 = sbr.rel (%p223) target = $region40
      $region39: #{tpu_custom_call.1} parent=5 // pred_region
        %s227 = ssub.s32 %s16, 1
        // Predicated region
        $region41: #{tpu_custom_call.1} parent=39 // pred_check
          %p228 = pneg %p54
        $region42: #{tpu_custom_call.1} parent=39 // pred_check_branch
          %230 = sbr.rel (%p228) target = $region44
        $region43: #{tpu_custom_call.1} parent=39 // pred_region
          %231 = dma.done [#allocation6], 512
        $region44: #{tpu_custom_call.1} parent=39 // pred_fallthru
          _
        // Predicated region
        $region45: #{tpu_custom_call.1} parent=39 // pred_check
          %p232 = pneg %p96
        $region46: #{tpu_custom_call.1} parent=39 // pred_check_branch
          %234 = sbr.rel (%p232) target = $region48
        $region47: #{tpu_custom_call.1} parent=39 // pred_region
          %235 = dma.done [#allocation9], 1024
        $region48: #{tpu_custom_call.1} parent=39 // pred_fallthru
          _
        %p236 = pneg %p54
        %p237 = pneg %p51
        %p238 = pneg %p75
        %p239 = pneg %p72
        %p240 = pneg %p96
        %p241 = pneg %p93
        %p242 = pneg %p117
        %p243 = pneg %p114
        %p244 = pneg %p138
        %p245 = pneg %p135
        %p246 = pneg %p166
        %p247 = pneg %p163
        %s248 = sand.u32 %s153, 1
        %s249 = scalar_lea.sflag [#allocation7], %s248
        %s250 = sand.u32 %s153, 1
        %s251 = smul.addr %s250, 32
        %s252 = scalar_lea.vmem [#allocation10], %s251
        %s253 = smul.u32 4, %s26
        %s254 = smul.u32 %s25, %s26
        %s255 = smul.u32 4, %s254
        %p256 = scmp.eq.s32.totalorder %s25, 0
        %p257 = scmp.eq.s32.totalorder %s26, 0
        %p258 = pnand %p256, %p257
        %p259 = pneg %p258
        // Predicated region
        $region49: #{tpu_custom_call.1} parent=39 // pred_check
          _
        $region50: #{tpu_custom_call.1} parent=39 // pred_check_branch
          %261 = sbr.rel (%p258) target = $region52
        $region51: #{tpu_custom_call.1} parent=39 // pred_region
          %vm262 = vcmask 7168
          %263 = vst.msk [vmem:[#allocation2] sm:$0xff] %vm262, 0.0
          %264 = vst.msk [vmem:[#allocation3] sm:$0xff] %vm262, 0.0
        $region52: #{tpu_custom_call.1} parent=39 // pred_fallthru
          _
        // Predicated region
        $region53: #{tpu_custom_call.1} parent=39 // pred_check
          %p265 = pneg %p256
        $region54: #{tpu_custom_call.1} parent=39 // pred_check_branch
          %267 = sbr.rel (%p265) target = $region56
        $region55: #{tpu_custom_call.1} parent=39 // pred_region
          %v268 = vld [vmem:[#allocation5] sm:$0xff]
          %v269 = vld [vmem:[#allocation5 + $0x8] sm:$0xff]
          %v270 = vld [vmem:[#allocation5 + $0x10] sm:$0xff]
          %v271 = vld [vmem:[#allocation5 + $0x18] sm:$0xff]
          %272 = vrot.lane.b32.xlu0 %v268, 17
          %v273 = vpop.permute.xlu0 %272
          %274 = vrot.lane.b32.xlu0 %v269, 17
          %v275 = vpop.permute.xlu0 %274
          %276 = vrot.lane.b32.xlu0 %v270, 17
          %v277 = vpop.permute.xlu0 %276
          %278 = vrot.lane.b32.xlu0 %v271, 17
          %v279 = vpop.permute.xlu0 %278
          %v280 = vlaneseq
          %v281 = vand.u32 %v280, 127
          %vm282 = vcmp.lt.s32.totalorder %v281, 17
          %v283 = vsel %vm282, %v277, %v279
          %v284 = vsel %vm282, %v275, %v277
          %v285 = vsel %vm282, %v273, %v275
          %v286 = vsel %vm282, %v279, %v273
          %v287 = vld [vmem:[#allocation8] ss:$8 sm:$0xf]
          %v289 = vlaneseq
          %v290 = vshrl.u32 %v289, 7
          %v291 = vsub.s32 0, %v290
          %v292 = vrot.slane %v287, %v291
          %v293 = vlaneseq
          %v294 = vshrl.u32 %v293, 7
          %v295 = vsub.s32 1, %v294
          %v296 = vrot.slane %v287, %v295
          %v297 = vlaneseq
          %v298 = vshrl.u32 %v297, 7
          %v299 = vsub.s32 2, %v298
          %v300 = vrot.slane %v287, %v299
          %v301 = vlaneseq
          %v302 = vshrl.u32 %v301, 7
          %v303 = vsub.s32 3, %v302
          %v304 = vrot.slane %v287, %v303
          %v309 = vmul.f32 %v286, %v292
          %v310 = vmul.f32 %v285, %v296
          %v311 = vmul.f32 %v284, %v300
          %v312 = vmul.f32 %v283, %v304
          %313 = vrot.lane.b32.xlu0 %v268, 16
          %v314 = vpop.permute.xlu0 %313
          %315 = vrot.lane.b32.xlu0 %v269, 16
          %v316 = vpop.permute.xlu0 %315
          %317 = vrot.lane.b32.xlu0 %v270, 16
          %v318 = vpop.permute.xlu0 %317
          %319 = vrot.lane.b32.xlu0 %v271, 16
          %v320 = vpop.permute.xlu0 %319
          %vm321 = vcmp.lt.s32.totalorder %v281, 16
          %v322 = vsel %vm321, %v318, %v320
          %v323 = vsel %vm321, %v316, %v318
          %v324 = vsel %vm321, %v314, %v316
          %v325 = vsel %vm321, %v320, %v314
          %s326 = scalar_lea.vmem [#allocation8], 1
          %v327 = vld [vmem:[%s326] ss:$8 sm:$0xf]
          %v329 = vlaneseq
          %v330 = vshrl.u32 %v329, 7
          %v331 = vsub.s32 0, %v330
          %v332 = vrot.slane %v327, %v331
          %v333 = vlaneseq
          %v334 = vshrl.u32 %v333, 7
          %v335 = vsub.s32 1, %v334
          %v336 = vrot.slane %v327, %v335
          %v337 = vlaneseq
          %v338 = vshrl.u32 %v337, 7
          %v339 = vsub.s32 2, %v338
          %v340 = vrot.slane %v327, %v339
          %v341 = vlaneseq
          %v342 = vshrl.u32 %v341, 7
          %v343 = vsub.s32 3, %v342
          %v344 = vrot.slane %v327, %v343
          %v349 = vmul.f32 %v325, %v332
          %v350 = vmul.f32 %v324, %v336
          %v351 = vmul.f32 %v323, %v340
          %v352 = vmul.f32 %v322, %v344
          %353 = vrot.lane.b32.xlu0 %v268, 15
          %v354 = vpop.permute.xlu0 %353
          %355 = vrot.lane.b32.xlu0 %v269, 15
          %v356 = vpop.permute.xlu0 %355
          %357 = vrot.lane.b32.xlu0 %v270, 15
          %v358 = vpop.permute.xlu0 %357
          %359 = vrot.lane.b32.xlu0 %v271, 15
          %v360 = vpop.permute.xlu0 %359
          %vm361 = vcmp.lt.s32.totalorder %v281, 15
          %v362 = vsel %vm361, %v358, %v360
          %v363 = vsel %vm361, %v356, %v358
          %v364 = vsel %vm361, %v354, %v356
          %v365 = vsel %vm361, %v360, %v354
          %s366 = scalar_lea.vmem [#allocation8], 2
          %v367 = vld [vmem:[%s366] ss:$8 sm:$0xf]
          %v369 = vlaneseq
          %v370 = vshrl.u32 %v369, 7
          %v371 = vsub.s32 0, %v370
          %v372 = vrot.slane %v367, %v371
          %v373 = vlaneseq
          %v374 = vshrl.u32 %v373, 7
          %v375 = vsub.s32 1, %v374
          %v376 = vrot.slane %v367, %v375
          %v377 = vlaneseq
          %v378 = vshrl.u32 %v377, 7
          %v379 = vsub.s32 2, %v378
          %v380 = vrot.slane %v367, %v379
          %v381 = vlaneseq
          %v382 = vshrl.u32 %v381, 7
          %v383 = vsub.s32 3, %v382
          %v384 = vrot.slane %v367, %v383
          %v389 = vmul.f32 %v365, %v372
          %v390 = vmul.f32 %v364, %v376
          %v391 = vmul.f32 %v363, %v380
          %v392 = vmul.f32 %v362, %v384
          %393 = vrot.lane.b32.xlu0 %v268, 1
          %v394 = vpop.permute.xlu0 %393
          %395 = vrot.lane.b32.xlu0 %v269, 1
          %v396 = vpop.permute.xlu0 %395
          %397 = vrot.lane.b32.xlu0 %v270, 1
          %v398 = vpop.permute.xlu0 %397
          %399 = vrot.lane.b32.xlu0 %v271, 1
          %v400 = vpop.permute.xlu0 %399
          %vm401 = vcmp.lt.s32.totalorder %v281, 1
          %v402 = vsel %vm401, %v398, %v400
          %v403 = vsel %vm401, %v396, %v398
          %v404 = vsel %vm401, %v394, %v396
          %v405 = vsel %vm401, %v400, %v394
          %s406 = scalar_lea.vmem [#allocation8], 3
          %v407 = vld [vmem:[%s406] ss:$8 sm:$0xf]
          %v409 = vlaneseq
          %v410 = vshrl.u32 %v409, 7
          %v411 = vsub.s32 0, %v410
          %v412 = vrot.slane %v407, %v411
          %v413 = vlaneseq
          %v414 = vshrl.u32 %v413, 7
          %v415 = vsub.s32 1, %v414
          %v416 = vrot.slane %v407, %v415
          %v417 = vlaneseq
          %v418 = vshrl.u32 %v417, 7
          %v419 = vsub.s32 2, %v418
          %v420 = vrot.slane %v407, %v419
          %v421 = vlaneseq
          %v422 = vshrl.u32 %v421, 7
          %v423 = vsub.s32 3, %v422
          %v424 = vrot.slane %v407, %v423
          %v429 = vmul.f32 %v405, %v412
          %v430 = vmul.f32 %v404, %v416
          %v431 = vmul.f32 %v403, %v420
          %v432 = vmul.f32 %v402, %v424
          %s433 = scalar_lea.vmem [#allocation8], 4
          %v434 = vld [vmem:[%s433] ss:$8 sm:$0xf]
          %v436 = vlaneseq
          %v437 = vshrl.u32 %v436, 7
          %v438 = vsub.s32 0, %v437
          %v439 = vrot.slane %v434, %v438
          %v440 = vlaneseq
          %v441 = vshrl.u32 %v440, 7
          %v442 = vsub.s32 1, %v441
          %v443 = vrot.slane %v434, %v442
          %v444 = vlaneseq
          %v445 = vshrl.u32 %v444, 7
          %v446 = vsub.s32 2, %v445
          %v447 = vrot.slane %v434, %v446
          %v448 = vlaneseq
          %v449 = vshrl.u32 %v448, 7
          %v450 = vsub.s32 3, %v449
          %v451 = vrot.slane %v434, %v450
          %v456 = vmul.f32 %v268, %v439
          %v457 = vmul.f32 %v269, %v443
          %v458 = vmul.f32 %v270, %v447
          %v459 = vmul.f32 %v271, %v451
          %460 = vrot.lane.b32.xlu0 %v268, 127
          %v461 = vpop.permute.xlu0 %460
          %462 = vrot.lane.b32.xlu0 %v269, 127
          %v463 = vpop.permute.xlu0 %462
          %464 = vrot.lane.b32.xlu0 %v270, 127
          %v465 = vpop.permute.xlu0 %464
          %466 = vrot.lane.b32.xlu0 %v271, 127
          %v467 = vpop.permute.xlu0 %466
          %vm468 = vcmp.lt.s32.totalorder %v281, 127
          %v469 = vsel %vm468, %v465, %v467
          %v470 = vsel %vm468, %v463, %v465
          %v471 = vsel %vm468, %v461, %v463
          %v472 = vsel %vm468, %v467, %v461
          %s473 = scalar_lea.vmem [#allocation8], 5
          %v474 = vld [vmem:[%s473] ss:$8 sm:$0xf]
          %v476 = vlaneseq
          %v477 = vshrl.u32 %v476, 7
          %v478 = vsub.s32 0, %v477
          %v479 = vrot.slane %v474, %v478
          %v480 = vlaneseq
          %v481 = vshrl.u32 %v480, 7
          %v482 = vsub.s32 1, %v481
          %v483 = vrot.slane %v474, %v482
          %v484 = vlaneseq
          %v485 = vshrl.u32 %v484, 7
          %v486 = vsub.s32 2, %v485
          %v487 = vrot.slane %v474, %v486
          %v488 = vlaneseq
          %v489 = vshrl.u32 %v488, 7
          %v490 = vsub.s32 3, %v489
          %v491 = vrot.slane %v474, %v490
          %v496 = vmul.f32 %v471, %v479
          %v497 = vmul.f32 %v470, %v483
          %v498 = vmul.f32 %v469, %v487
          %v499 = vmul.f32 %v472, %v491
          %500 = vrot.lane.b32.xlu0 %v268, 113
          %v501 = vpop.permute.xlu0 %500
          %502 = vrot.lane.b32.xlu0 %v269, 113
          %v503 = vpop.permute.xlu0 %502
          %504 = vrot.lane.b32.xlu0 %v270, 113
          %v505 = vpop.permute.xlu0 %504
          %506 = vrot.lane.b32.xlu0 %v271, 113
          %v507 = vpop.permute.xlu0 %506
          %vm508 = vcmp.lt.s32.totalorder %v281, 113
          %v509 = vsel %vm508, %v505, %v507
          %v510 = vsel %vm508, %v503, %v505
          %v511 = vsel %vm508, %v501, %v503
          %v512 = vsel %vm508, %v507, %v501
          %s513 = scalar_lea.vmem [#allocation8], 6
          %v514 = vld [vmem:[%s513] ss:$8 sm:$0xf]
          %v516 = vlaneseq
          %v517 = vshrl.u32 %v516, 7
          %v518 = vsub.s32 0, %v517
          %v519 = vrot.slane %v514, %v518
          %v520 = vlaneseq
          %v521 = vshrl.u32 %v520, 7
          %v522 = vsub.s32 1, %v521
          %v523 = vrot.slane %v514, %v522
          %v524 = vlaneseq
          %v525 = vshrl.u32 %v524, 7
          %v526 = vsub.s32 2, %v525
          %v527 = vrot.slane %v514, %v526
          %v528 = vlaneseq
          %v529 = vshrl.u32 %v528, 7
          %v530 = vsub.s32 3, %v529
          %v531 = vrot.slane %v514, %v530
          %v536 = vmul.f32 %v511, %v519
          %v537 = vmul.f32 %v510, %v523
          %v538 = vmul.f32 %v509, %v527
          %v539 = vmul.f32 %v512, %v531
          %540 = vrot.lane.b32.xlu0 %v268, 112
          %v541 = vpop.permute.xlu0 %540
          %542 = vrot.lane.b32.xlu0 %v269, 112
          %v543 = vpop.permute.xlu0 %542
          %544 = vrot.lane.b32.xlu0 %v270, 112
          %v545 = vpop.permute.xlu0 %544
          %546 = vrot.lane.b32.xlu0 %v271, 112
          %v547 = vpop.permute.xlu0 %546
          %vm548 = vcmp.lt.s32.totalorder %v281, 112
          %v549 = vsel %vm548, %v545, %v547
          %v550 = vsel %vm548, %v543, %v545
          %v551 = vsel %vm548, %v541, %v543
          %v552 = vsel %vm548, %v547, %v541
          %s553 = scalar_lea.vmem [#allocation8], 7
          %v554 = vld [vmem:[%s553] ss:$8 sm:$0xf]
          %v556 = vlaneseq
          %v557 = vshrl.u32 %v556, 7
          %v558 = vsub.s32 0, %v557
          %v559 = vrot.slane %v554, %v558
          %v560 = vlaneseq
          %v561 = vshrl.u32 %v560, 7
          %v562 = vsub.s32 1, %v561
          %v563 = vrot.slane %v554, %v562
          %v564 = vlaneseq
          %v565 = vshrl.u32 %v564, 7
          %v566 = vsub.s32 2, %v565
          %v567 = vrot.slane %v554, %v566
          %v568 = vlaneseq
          %v569 = vshrl.u32 %v568, 7
          %v570 = vsub.s32 3, %v569
          %v571 = vrot.slane %v554, %v570
          %v576 = vmul.f32 %v551, %v559
          %v577 = vmul.f32 %v550, %v563
          %v578 = vmul.f32 %v549, %v567
          %v579 = vmul.f32 %v552, %v571
          %580 = vrot.lane.b32.xlu0 %v268, 111
          %v581 = vpop.permute.xlu0 %580
          %582 = vrot.lane.b32.xlu0 %v269, 111
          %v583 = vpop.permute.xlu0 %582
          %584 = vrot.lane.b32.xlu0 %v270, 111
          %v585 = vpop.permute.xlu0 %584
          %586 = vrot.lane.b32.xlu0 %v271, 111
          %v587 = vpop.permute.xlu0 %586
          %vm588 = vcmp.lt.s32.totalorder %v281, 111
          %v589 = vsel %vm588, %v585, %v587
          %v590 = vsel %vm588, %v583, %v585
          %v591 = vsel %vm588, %v581, %v583
          %v592 = vsel %vm588, %v587, %v581
          %s593 = scalar_lea.vmem [#allocation8], 32
          %v594 = vld [vmem:[%s593] ss:$8 sm:$0xf]
          %v596 = vlaneseq
          %v597 = vshrl.u32 %v596, 7
          %v598 = vsub.s32 0, %v597
          %v599 = vrot.slane %v594, %v598
          %v600 = vlaneseq
          %v601 = vshrl.u32 %v600, 7
          %v602 = vsub.s32 1, %v601
          %v603 = vrot.slane %v594, %v602
          %v604 = vlaneseq
          %v605 = vshrl.u32 %v604, 7
          %v606 = vsub.s32 2, %v605
          %v607 = vrot.slane %v594, %v606
          %v608 = vlaneseq
          %v609 = vshrl.u32 %v608, 7
          %v610 = vsub.s32 3, %v609
          %v611 = vrot.slane %v594, %v610
          %v616 = vmul.f32 %v591, %v599
          %v617 = vmul.f32 %v590, %v603
          %v618 = vmul.f32 %v589, %v607
          %v619 = vmul.f32 %v592, %v611
          %v620 = vld [vmem:[%s1] sm:$0xff]
          %vm621 = vcmask 588800
          %v623 = vsel %vm621, %v620, 0
          %625 = vmatprep.subr.mxu0 %v310
          %626 = vmatpush1.msra.mxu0 %v309
          %627 = vmatprep.subr.mxu0 %v350
          %628 = vmatpush1.msra.mxu0 %v349
          %629 = vmatprep.subr.mxu0 %v390
          %630 = vmatpush1.msra.mxu0 %v389
          %631 = vmatprep.subr.mxu0 %v430
          %632 = vmatpush1.msra.mxu0 %v429
          %633 = vmatprep.subr.mxu0 %v457
          %634 = vmatpush1.msra.mxu0 %v456
          %635 = vmatprep.subr.mxu0 %v497
          %636 = vmatpush1.msra.mxu0 %v496
          %637 = vmatprep.subr.mxu0 %v537
          %638 = vmatpush1.msra.mxu0 %v536
          %639 = vmatprep.subr.mxu0 %v577
          %640 = vmatpush1.msra.mxu0 %v576
          %641 = vmatprep.subr.mxu0 %v617
          %642 = vmatpush1.msra.mxu0 %v616
          %643 = vmatprep.subr.mxu0 0.0
          %644 = vmatpush1.msra.mxu0 0.0
          %645 = vmatprep.subr.mxu0 0.0
          %646 = vmatpush1.msra.mxu0 0.0
          %647 = vmatprep.subr.mxu0 0.0
          %648 = vmatpush1.msra.mxu0 0.0
          %649 = vmatprep.subr.mxu0 0.0
          %650 = vmatpush1.msra.mxu0 0.0
          %651 = vmatprep.subr.mxu0 0.0
          %652 = vmatpush1.msra.mxu0 0.0
          %653 = vmatprep.subr.mxu0 0.0
          %654 = vmatpush1.msra.mxu0 0.0
          %655 = vmatprep.subr.mxu0 0.0
          %656 = vmatpush1.msra.mxu0 0.0
          %657 = vmatprep.subr.mxu0 0.0
          %658 = vmatpush1.msra.mxu0 0.0
          %659 = vmatprep.subr.mxu0 0.0
          %660 = vmatpush1.msra.mxu0 0.0
          %661 = vmatprep.subr.mxu0 0.0
          %662 = vmatpush1.msra.mxu0 0.0
          %663 = vmatprep.subr.mxu0 0.0
          %664 = vmatpush1.msra.mxu0 0.0
          %665 = vmatprep.subr.mxu0 0.0
          %666 = vmatpush1.msra.mxu0 0.0
          %667 = vmatprep.subr.mxu0 0.0
          %668 = vmatpush1.msra.mxu0 0.0
          %669 = vmatprep.subr.mxu0 0.0
          %670 = vmatpush1.msra.mxu0 0.0
          %671 = vmatprep.subr.mxu0 0.0
          %672 = vmatpush1.msra.mxu0 0.0
          %673 = vmatprep.subr.mxu0 0.0
          %674 = vmatpush1.msra.mxu0 0.0
          %675 = vmatprep.subr.mxu0 0.0
          %676 = vmatpush1.msra.mxu0 0.0
          %677 = vmatprep.subr.mxu0 0.0
          %678 = vmatpush1.msra.mxu0 0.0
          %679 = vmatprep.subr.mxu0 0.0
          %680 = vmatpush1.msra.mxu0 0.0
          %681 = vmatprep.subr.mxu0 0.0
          %682 = vmatpush1.msra.mxu0 0.0
          %683 = vmatprep.subr.mxu0 0.0
          %684 = vmatpush1.msra.mxu0 0.0
          %685 = vmatprep.subr.mxu0 0.0
          %686 = vmatpush1.msra.mxu0 0.0
          %687 = vmatprep.subr.mxu0 0.0
          %688 = vmatpush1.msra.mxu0 0.0
          %689 = vmatprep.mubr.f32.mxu0 0.0
          %690 = vmatmul.mubr.f32.gmra.mrb[0].mxu0 %v623
          %v691 = vpop.f32.mrb[0].mxu0
          %v692 = vadd.f32 0.0, %v691
          %v693 = vpop.f32.mrb[0].mxu0
          %v694 = vadd.f32 0.0, %v693
          %695 = vdwg.mxu0
          %696 = vmatprep.subr.mxu0 %v312
          %697 = vmatpush1.msra.mxu0 %v311
          %698 = vmatprep.subr.mxu0 %v352
          %699 = vmatpush1.msra.mxu0 %v351
          %700 = vmatprep.subr.mxu0 %v392
          %701 = vmatpush1.msra.mxu0 %v391
          %702 = vmatprep.subr.mxu0 %v432
          %703 = vmatpush1.msra.mxu0 %v431
          %704 = vmatprep.subr.mxu0 %v459
          %705 = vmatpush1.msra.mxu0 %v458
          %706 = vmatprep.subr.mxu0 %v499
          %707 = vmatpush1.msra.mxu0 %v498
          %708 = vmatprep.subr.mxu0 %v539
          %709 = vmatpush1.msra.mxu0 %v538
          %710 = vmatprep.subr.mxu0 %v579
          %711 = vmatpush1.msra.mxu0 %v578
          %712 = vmatprep.subr.mxu0 %v619
          %713 = vmatpush1.msra.mxu0 %v618
          %714 = vmatprep.subr.mxu0 0.0
          %715 = vmatpush1.msra.mxu0 0.0
          %716 = vmatprep.subr.mxu0 0.0
          %717 = vmatpush1.msra.mxu0 0.0
          %718 = vmatprep.subr.mxu0 0.0
          %719 = vmatpush1.msra.mxu0 0.0
          %720 = vmatprep.subr.mxu0 0.0
          %721 = vmatpush1.msra.mxu0 0.0
          %722 = vmatprep.subr.mxu0 0.0
          %723 = vmatpush1.msra.mxu0 0.0
          %724 = vmatprep.subr.mxu0 0.0
          %725 = vmatpush1.msra.mxu0 0.0
          %726 = vmatprep.subr.mxu0 0.0
          %727 = vmatpush1.msra.mxu0 0.0
          %728 = vmatprep.subr.mxu0 0.0
          %729 = vmatpush1.msra.mxu0 0.0
          %730 = vmatprep.subr.mxu0 0.0
          %731 = vmatpush1.msra.mxu0 0.0
          %732 = vmatprep.subr.mxu0 0.0
          %733 = vmatpush1.msra.mxu0 0.0
          %734 = vmatprep.subr.mxu0 0.0
          %735 = vmatpush1.msra.mxu0 0.0
          %736 = vmatprep.subr.mxu0 0.0
          %737 = vmatpush1.msra.mxu0 0.0
          %738 = vmatprep.subr.mxu0 0.0
          %739 = vmatpush1.msra.mxu0 0.0
          %740 = vmatprep.subr.mxu0 0.0
          %741 = vmatpush1.msra.mxu0 0.0
          %742 = vmatprep.subr.mxu0 0.0
          %743 = vmatpush1.msra.mxu0 0.0
          %744 = vmatprep.subr.mxu0 0.0
          %745 = vmatpush1.msra.mxu0 0.0
          %746 = vmatprep.subr.mxu0 0.0
          %747 = vmatpush1.msra.mxu0 0.0
          %748 = vmatprep.subr.mxu0 0.0
          %749 = vmatpush1.msra.mxu0 0.0
          %750 = vmatprep.subr.mxu0 0.0
          %751 = vmatpush1.msra.mxu0 0.0
          %752 = vmatprep.subr.mxu0 0.0
          %753 = vmatpush1.msra.mxu0 0.0
          %754 = vmatprep.subr.mxu0 0.0
          %755 = vmatpush1.msra.mxu0 0.0
          %756 = vmatprep.subr.mxu0 0.0
          %757 = vmatpush1.msra.mxu0 0.0
          %758 = vmatprep.subr.mxu0 0.0
          %759 = vmatpush1.msra.mxu0 0.0
          %760 = vmatprep.mubr.f32.mxu0 0.0
          %761 = vmatmul.mubr.f32.gmra.mrb[0].mxu0 %v623
          %v762 = vpop.f32.mrb[0].mxu0
          %v763 = vadd.f32 0.0, %v762
          %v764 = vpop.f32.mrb[0].mxu0
          %v765 = vadd.f32 0.0, %v764
          %766 = vdwg.mxu0
          %v767 = vld [vmem:[#allocation2] sm:$0xff]
          %v768 = vadd.f32 %v692, %v694
          %v769 = vadd.f32 %v768, %v763
          %v770 = vadd.f32 %v769, %v765
          %771 = vadd.xlane.f32.xlu0 %v770
          %v772 = vpop.xlane.xlu0 %771
          %v773 = vadd.f32 %v767, %v772
          %vm774 = vcmask 7168
          %775 = vst.msk [vmem:[#allocation2] sm:$0xff] %vm774, %v773
          %v776 = vld [vmem:[#allocation3] sm:$0xff]
          %v777 = vmul.f32 %v692, %v692
          %v778 = vmul.f32 %v694, %v694
          %v779 = vmul.f32 %v763, %v763
          %v780 = vmul.f32 %v765, %v765
          %v781 = vadd.f32 %v777, %v778
          %v782 = vadd.f32 %v781, %v779
          %v783 = vadd.f32 %v782, %v780
          %784 = vadd.xlane.f32.xlu0 %v783
          %v785 = vpop.xlane.xlu0 %784
          %v786 = vadd.f32 %v776, %v785
          %787 = vst.msk [vmem:[#allocation3] sm:$0xff] %vm774, %v786
          %s788 = smul.u32 %s26, 4
          %s789 = smul.addr %s788, 8
          %s790 = scalar_lea.vmem [#allocation4], %s789
          %791 = vst [vmem:[%s790] sm:$0xff] %v692
          %792 = vst [vmem:[%s790 + $0x8] sm:$0xff] %v694
          %793 = vst [vmem:[%s790 + $0x10] sm:$0xff] %v763
          %794 = vst [vmem:[%s790 + $0x18] sm:$0xff] %v765
        $region56: #{tpu_custom_call.1} parent=39 // pred_fallthru
          _
        %p795 = scmp.eq.s32.totalorder %s25, 1
        // Predicated region
        $region57: #{tpu_custom_call.1} parent=39 // pred_check
          %p796 = pneg %p795
        $region58: #{tpu_custom_call.1} parent=39 // pred_check_branch
          %798 = sbr.rel (%p796) target = $region60
        $region59: #{tpu_custom_call.1} parent=39 // pred_region
          %s799 = smul.u32 %s26, 4
          %s800 = smul.addr %s799, 8
          %s801 = scalar_lea.vmem [#allocation4], %s800
          %v802 = vld [vmem:[%s801] sm:$0xff]
          %v803 = vld [vmem:[%s801 + $0x8] sm:$0xff]
          %v804 = vld [vmem:[%s801 + $0x10] sm:$0xff]
          %v805 = vld [vmem:[%s801 + $0x18] sm:$0xff]
          %v806 = vld [vmem:[#allocation2] sm:$0xff]
          %v807 = vmul.f32 %v806, 0.001953125
          %v808 = vld [vmem:[#allocation3] sm:$0xff]
          %v809 = vmul.f32 %v808, 0.001953125
          %v810 = vmul.f32 %v807, %v807
          %v811 = vsub.f32 %v809, %v810
          %v812 = vld [vmem:[%s3] sm:$0xff]
          %v813 = vadd.f32 %v811, 1e-05
          %v814 = vrsqrt.pop %v813
          %v815 = vmul.f32 %v812, %v814
          %v816 = vld [vmem:[%s4] sm:$0xff]
          %v817 = vmul.f32 %v807, %v815
          %v818 = vsub.f32 %v816, %v817
          %820 = vset.pattern.permute.xlu0 0
          %821 = vperm.xlu0 %820, %v815
          %v822 = vpop.permute.xlu0 %821
          %v824 = vmul.f32 %v802, %v822
          %v825 = vmul.f32 %v803, %v822
          %v826 = vmul.f32 %v804, %v822
          %v827 = vmul.f32 %v805, %v822
          %829 = vset.pattern.permute.xlu0 0
          %830 = vperm.xlu0 %829, %v818
          %v831 = vpop.permute.xlu0 %830
          %v833 = vadd.f32 %v824, %v831
          %v834 = vadd.f32 %v825, %v831
          %v835 = vadd.f32 %v826, %v831
          %v836 = vadd.f32 %v827, %v831
          %v837 = vmax.f32 %v833, 0.0
          %v838 = vmax.f32 %v834, 0.0
          %v839 = vmax.f32 %v835, 0.0
          %v840 = vmax.f32 %v836, 0.0
          %v841 = vld [vmem:[#allocation5] sm:$0xff]
          %v842 = vld [vmem:[#allocation5 + $0x8] sm:$0xff]
          %v843 = vld [vmem:[#allocation5 + $0x10] sm:$0xff]
          %v844 = vld [vmem:[#allocation5 + $0x18] sm:$0xff]
          %v845 = vadd.f32 %v837, %v841
          %v846 = vadd.f32 %v838, %v842
          %v847 = vadd.f32 %v839, %v843
          %v848 = vadd.f32 %v840, %v844
          %849 = vst [vmem:[%s252] sm:$0xff] %v845
          %850 = vst [vmem:[%s252 + $0x8] sm:$0xff] %v846
          %851 = vst [vmem:[%s252 + $0x10] sm:$0xff] %v847
          %852 = vst [vmem:[%s252 + $0x18] sm:$0xff] %v848
        $region60: #{tpu_custom_call.1} parent=39 // pred_fallthru
          _
        %s853 = sand.u32 %s153, 1
        %s854 = scalar_lea.sflag [#allocation7], %s853
        %s855 = sand.u32 %s153, 1
        %s856 = smul.addr %s855, 32
        %s857 = scalar_lea.vmem [#allocation10], %s856
        // Predicated region
        $region61: #{tpu_custom_call.1} parent=39 // pred_check
          %p858 = pneg %p163
        $region62: #{tpu_custom_call.1} parent=39 // pred_check_branch
          %860 = sbr.rel (%p858) target = $region64
        $region63: #{tpu_custom_call.1} parent=39 // pred_region
          %s861 = smul.u32 %s25, %s26
          %s862 = smul.u32 4, %s861
          %s864 = ssub.s32 512, 512
          %865 = vsyncadd %s854, %s864
          %s866 = smul.addr %s862, 128
          %s867 = scalar_lea.hbm %s5, %s866
          %s869 = sshll.u32 %s857, 4
          %s870 = int_to_ptr.vmem [resolvable:$true] %s869
          %872 = dma.vmem_to_hbm [thread:$0]  %s870, 512, %s867, %s854
        $region64: #{tpu_custom_call.1} parent=39 // pred_fallthru
          _
      $region40: #{tpu_custom_call.1} parent=5 // pred_fallthru
        _
      %p873 = scmp.le.s32.totalorder 2, %s16
      // Predicated region
      $region65: #{tpu_custom_call.1} parent=5 // pred_check
        %p874 = pneg %p873
      $region66: #{tpu_custom_call.1} parent=5 // pred_check_branch
        %876 = sbr.rel (%p874) target = $region68
      $region67: #{tpu_custom_call.1} parent=5 // pred_region
        %s877 = ssub.s32 %s16, 2
        // Predicated region
        $region69: #{tpu_custom_call.1} parent=67 // pred_check
          %p878 = pneg %p169
        $region70: #{tpu_custom_call.1} parent=67 // pred_check_branch
          %880 = sbr.rel (%p878) target = $region72
        $region71: #{tpu_custom_call.1} parent=67 // pred_region
          %s881 = sand.u32 %s154, 1
          %s882 = scalar_lea.sflag [#allocation7], %s881
          %s883 = sand.u32 %s154, 1
          %s884 = smul.addr %s883, 32
          %s885 = scalar_lea.vmem [#allocation10], %s884
          %886 = dma.done %s882, 512
        $region72: #{tpu_custom_call.1} parent=67 // pred_fallthru
          _
      $region68: #{tpu_custom_call.1} parent=5 // pred_fallthru
        _
    $region6: #{tpu_custom_call.1} parent=1 // loop_footer
      %s20 = sadd.s32 1, %s16
    $region7: #{tpu_custom_call.1} parent=1 // loop_footer_branch
      %15 = sbr.rel target = $region3
    $region8: #{tpu_custom_call.1} parent=1 // loop_exit
      _
    %887 = vsyncpa [#allocation6], 1
    %s888 = scalar_lea.sflag [#allocation6], 1
    %889 = vsyncpa %s888, 1
    %890 = vsyncpa [#allocation9], 1
    %891 = vsyncpa [#allocation7], 1
    %s892 = scalar_lea.sflag [#allocation7], 1
    %893 = vsyncpa %s892, 1

</llo_original>
